<compile_context>
chip_gen: v5e
topology: v5e:2x2
jax: 0.10.0
libtpu: 0.0.40
codegen_flags: <defaults>
</compile_context>

<pallas_src>
import jax
import jax.numpy as jnp
from jax import lax
from jax.experimental import pallas as pl
from jax.experimental.pallas import tpu as pltpu

INPUT_SIZE = 50
OUTPUT_SIZE = 20
LANE = 128  # TPU lane width; output padded to this for unmasked stores.


def linear_kernel(x_ref, w_ref, b_ref, o_ref):
    # x_ref: (B, K), w_ref: (K, N_pad), b_ref: (1, N_pad), o_ref: (B, N_pad)
    x = x_ref[...]
    w = w_ref[...]
    # Canonical contraction: x (B,K) @ w (K,N_pad) on the MXU, f32 accumulate.
    y = lax.dot_general(
        x, w,
        dimension_numbers=(((1,), (0,)), ((), ())),
        preferred_element_type=jnp.float32,
    )
    o_ref[...] = (y + b_ref[...]).astype(o_ref.dtype)


def linear_forward(x, weight, bias):
    """x: (B, in_features), weight: (out_f, in_f) [PyTorch layout], bias: (out_f,)."""
    B, in_f = x.shape
    out_f = weight.shape[0]

    # Pad the output (lane) dimension to a multiple of 128 so the kernel's
    # stores are lane-dense.  Padding lives entirely in the wrapper (one-time
    # XLA ops on the parameters); the kernel itself sees aligned shapes.
    n_pad = max(LANE, ((out_f + LANE - 1) // LANE) * LANE)

    # Pre-transpose to (in_f, n_pad) and zero-pad the extra columns.
    w_t = jnp.zeros((in_f, n_pad), dtype=weight.dtype).at[:, :out_f].set(weight.T)
    b_p = jnp.zeros((1, n_pad), dtype=bias.dtype).at[:, :out_f].set(bias)

    flops = 2 * B * in_f * n_pad
    bytes_accessed = 4 * (B * in_f + in_f * n_pad + n_pad + B * n_pad)

    out_padded = pl.pallas_call(
        linear_kernel,
        out_shape=jax.ShapeDtypeStruct((B, n_pad), x.dtype),
        in_specs=[
            pl.BlockSpec(memory_space=pltpu.MemorySpace.VMEM),
            pl.BlockSpec(memory_space=pltpu.MemorySpace.VMEM),
            pl.BlockSpec(memory_space=pltpu.MemorySpace.VMEM),
        ],
        out_specs=pl.BlockSpec(memory_space=pltpu.MemorySpace.VMEM),
        cost_estimate=pl.CostEstimate(
            flops=flops, transcendentals=0, bytes_accessed=bytes_accessed
        ),
    )(x, w_t, b_p)

    # Slice away the padded columns outside the kernel.
    return out_padded[:, :out_f]


def reference_forward(x, weight, bias):
    return x @ weight.T + bias


if __name__ == "__main__":
    key = jax.random.PRNGKey(0)
    k_x, k_w, k_b = jax.random.split(key, 3)

    batch = 8
    x = jax.random.normal(k_x, (batch, INPUT_SIZE), dtype=jnp.float32)

    # Deterministic parameter init mimicking nn.Linear's uniform(-1/sqrt(in), 1/sqrt(in)).
    bound = 1.0 / (INPUT_SIZE ** 0.5)
    weight = jax.random.uniform(
        k_w, (OUTPUT_SIZE, INPUT_SIZE), minval=-bound, maxval=bound, dtype=jnp.float32
    )
    bias = jax.random.uniform(
        k_b, (OUTPUT_SIZE,), minval=-bound, maxval=bound, dtype=jnp.float32
    )

    out = linear_forward(x, weight, bias)
    out = jax.block_until_ready(out)

    ref = reference_forward(x, weight, bias)
    assert out.shape == (batch, OUTPUT_SIZE), out.shape
    assert jnp.allclose(out, ref, atol=1e-5, rtol=1e-5), "mismatch vs reference"

    # (The PyTorch module's print is a host-side side effect, not kernel compute.)
    print("\tIn Model: input size", x.shape, "output size", out.shape)
    print("KERNEL_OK")
</pallas_src>

<mosaic_0001>
module attributes {stable_mosaic.version = 11 : i64} {
  func.func @linear_kernel(%arg0: memref<8x50xf32, #tpu.memory_space<vmem>>, %arg1: memref<50x128xf32, #tpu.memory_space<vmem>>, %arg2: memref<1x128xf32, #tpu.memory_space<vmem>>, %arg3: memref<8x128xf32, #tpu.memory_space<vmem>>) attributes {dimension_semantics = [], scalar_prefetch = 0 : i64, scratch_operands = 0 : i64, tpu.core_type = #tpu.core_type<tc>} {
    %c0 = arith.constant 0 : index
    %c0_0 = arith.constant 0 : index
    %0 = vector.load %arg0[%c0, %c0_0] : memref<8x50xf32, #tpu.memory_space<vmem>>, vector<8x50xf32>
    %c0_1 = arith.constant 0 : index
    %c0_2 = arith.constant 0 : index
    %1 = vector.load %arg1[%c0_1, %c0_2] : memref<50x128xf32, #tpu.memory_space<vmem>>, vector<50x128xf32>
    %cst = arith.constant dense<0.000000e+00> : vector<8x128xf32>
    %2 = tpu.matmul %0, %1, %cst {dimension_numbers = #tpu.dot_dimension_numbers<[1], [0], [0], [1], [0, 0, 1, 1], [], []>} : vector<8x50xf32>, vector<50x128xf32>, vector<8x128xf32> -> vector<8x128xf32>
    %c0_3 = arith.constant 0 : index
    %c0_4 = arith.constant 0 : index
    %3 = vector.load %arg2[%c0_3, %c0_4] : memref<1x128xf32, #tpu.memory_space<vmem>>, vector<1x128xf32>
    %4 = vector.broadcast %3 : vector<1x128xf32> to vector<8x128xf32>
    %5 = arith.addf %2, %4 : vector<8x128xf32>
    %c0_5 = arith.constant 0 : index
    %c0_6 = arith.constant 0 : index
    %6 = vector.load %arg3[%c0_5, %c0_6] : memref<8x128xf32, #tpu.memory_space<vmem>>, vector<8x128xf32>
    tpu.vector_store %arg3[%c0_5, %c0_6], %5 {strides = array<i32>} : memref<8x128xf32, #tpu.memory_space<vmem>>, vector<8x128xf32>,
    return
  }
}

</mosaic_0001>

<llo_original>
// kernel: tpu_custom_call.1
$region0: #{tpu_custom_call.1}
  #allocation0 [shape = 'u32[]', space=smem, size = 0x4, offset = 0x4, fixed_abs, tag = 'smem constant byte address 0x4 - core index']
  #allocation1 [shape = 'u32[72,128]{1,0:T(1,128)}', space=vmem, size = 0x9000, scoped, tag = 'internal scratch']
  %s0 = inlined_call_operand.hbm [shape: f32[8,50], index: 0, kind: input, shape index: {}]
  %s1 = inlined_call_operand.hbm [shape: f32[50,128], index: 1, kind: input, shape index: {}]
  %s2 = inlined_call_operand.vmem [shape: f32[1,128], index: 2, kind: input, shape index: {}]
  %s3 = inlined_call_operand.hbm [shape: f32[8,128], index: 3, kind: output, shape index: {}]
  %s4 = sld [smem:[#allocation0]]
  $region30: #{tpu_custom_call.1} parent=0
    _
  %s6 = ssub.s32 1, %s4
  %s7 = scalar_select 0, %s6, %s4
  $region1: #{tpu_custom_call.1} parent=0
    #allocation2 [shape = 'u8[4096]{0}', space=vmem, size = 0x1000, scoped, tag = 'input window, operand 0, single buffered']
    #allocation3 [shape = 's32[1]{0}', space=sflag, size = 0x4, scoped, tag = 'scoped memory for tpu_custom_call.1']
    #allocation4 [shape = 's32[1]{0}', space=sflag, size = 0x4, scoped, tag = 'scoped memory for tpu_custom_call.1']
    #allocation5 [shape = 'u8[28672]{0}', space=vmem, size = 0x7000, scoped, tag = 'input window, operand 1, single buffered']
    #allocation6 [shape = 's32[1]{0}', space=sflag, size = 0x4, scoped, tag = 'scoped memory for tpu_custom_call.1']
    #allocation7 [shape = 'u8[4096]{0}', space=vmem, size = 0x1000, scoped, tag = 'output window, operand 0, single buffered']
    %8 = vsyncpa [#allocation3], 0
    %9 = vsyncpa [#allocation6], 0
    %10 = vsyncpa [#allocation4], 0
    // Predicated region
    $region2: #{tpu_custom_call.1} parent=1 // pred_check
      _
    $region3: #{tpu_custom_call.1} parent=1 // pred_check_branch
      %12 = sbr.rel (0) target = $region5
    $region4: #{tpu_custom_call.1} parent=1 // pred_region
      %14 = vsyncadd [#allocation3], 0
      %s16 = sshll.u32 %s0, 4
      %s17 = int_to_ptr.hbm [resolvable:$true] %s16
      %s18 = sshll.u32 [#allocation2], 4
      %s19 = int_to_ptr.vmem [resolvable:$true] %s18
      %21 = dma.hbm_to_vmem [thread:$0]  %s17, 128, %s19, [#allocation3]
    $region5: #{tpu_custom_call.1} parent=1 // pred_fallthru
      _
    // Predicated region
    $region6: #{tpu_custom_call.1} parent=1 // pred_check
      _
    $region7: #{tpu_custom_call.1} parent=1 // pred_check_branch
      %23 = sbr.rel (0) target = $region9
    $region8: #{tpu_custom_call.1} parent=1 // pred_region
      %25 = vsyncadd [#allocation6], 0
      %s26 = sshll.u32 %s1, 4
      %s27 = int_to_ptr.hbm [resolvable:$true] %s26
      %s28 = sshll.u32 [#allocation5], 4
      %s29 = int_to_ptr.vmem [resolvable:$true] %s28
      %34 = dma.hbm_to_vmem [thread:$0]  %s27, 896, %s29, [#allocation6], 128, 128, 8
    $region9: #{tpu_custom_call.1} parent=1 // pred_fallthru
      _
    // Predicated region
    $region10: #{tpu_custom_call.1} parent=1 // pred_check
      _
    $region11: #{tpu_custom_call.1} parent=1 // pred_check_branch
      %36 = sbr.rel (0) target = $region13
    $region12: #{tpu_custom_call.1} parent=1 // pred_region
      _
    $region13: #{tpu_custom_call.1} parent=1 // pred_fallthru
      _
    // Predicated region
    $region14: #{tpu_custom_call.1} parent=1 // pred_check
      _
    $region15: #{tpu_custom_call.1} parent=1 // pred_check_branch
      %38 = sbr.rel (0) target = $region17
    $region16: #{tpu_custom_call.1} parent=1 // pred_region
      %40 = dma.done [#allocation3], 128
    $region17: #{tpu_custom_call.1} parent=1 // pred_fallthru
      _
    // Predicated region
    $region18: #{tpu_custom_call.1} parent=1 // pred_check
      _
    $region19: #{tpu_custom_call.1} parent=1 // pred_check_branch
      %42 = sbr.rel (0) target = $region21
    $region20: #{tpu_custom_call.1} parent=1 // pred_region
      %44 = dma.done [#allocation6], 896
    $region21: #{tpu_custom_call.1} parent=1 // pred_fallthru
      _
    %v45 = vld [vmem:[#allocation2] sm:$0xff]
    %v46 = vld [vmem:[#allocation5] sm:$0xff]
    %v47 = vld [vmem:[#allocation5 + $0x8] sm:$0xff]
    %v48 = vld [vmem:[#allocation5 + $0x10] sm:$0xff]
    %v49 = vld [vmem:[#allocation5 + $0x18] sm:$0xff]
    %v50 = vld [vmem:[#allocation5 + $0x20] sm:$0xff]
    %v51 = vld [vmem:[#allocation5 + $0x28] sm:$0xff]
    %v52 = vld [vmem:[#allocation5 + $0x30] sm:$0x3]
    %v53 = vld [vmem:[%s2] sm:$0x1]
    %v55 = vperm.slane %v53, 0
    %vm57 = vcmask 408576
    %v59 = vsel %vm57, %v45, 0
    %vm61 = vcmask 1041408
    %v63 = vsel %vm61, %v52, 0
    %65 = vmatpush.msra.mxu0 0.0
    %66 = vmatpush.msra.mxu0 0.0
    %67 = vmatpush.msra.mxu0 0.0
    %68 = vmatpush.msra.mxu0 0.0
    %69 = vmatpush.msra.mxu0 0.0
    %70 = vmatpush.msra.mxu0 0.0
    %71 = vmatpush.msra.mxu0 0.0
    %72 = vmatpush.msra.mxu0 0.0
    %73 = vmatpush.msra.mxu0 0.0
    %74 = vmatpush.msra.mxu0 %v63
    %75 = vmatpush.msra.mxu0 %v51
    %76 = vmatpush.msra.mxu0 %v50
    %77 = vmatpush.msra.mxu0 %v49
    %78 = vmatpush.msra.mxu0 %v48
    %79 = vmatpush.msra.mxu0 %v47
    %80 = vmatpush.msra.mxu0 %v46
    %81 = vmatmul.f32.gmra.mxu0 %v59
    %v82 = vpop.f32.mrf.mxu0
    %v83 = vadd.f32 %v55, %v82
    %84 = vdwg.mxu0
    %85 = vst [vmem:[#allocation7] sm:$0xff] %v83
    // Predicated region
    $region22: #{tpu_custom_call.1} parent=1 // pred_check
      _
    $region23: #{tpu_custom_call.1} parent=1 // pred_check_branch
      %87 = sbr.rel (0) target = $region25
    $region24: #{tpu_custom_call.1} parent=1 // pred_region
      %89 = vsyncadd [#allocation4], 0
      %s91 = sshll.u32 [#allocation7], 4
      %s92 = int_to_ptr.vmem [resolvable:$true] %s91
      %s93 = sshll.u32 %s3, 4
      %s94 = int_to_ptr.hbm [resolvable:$true] %s93
      %96 = dma.vmem_to_hbm [thread:$0]  %s92, 128, %s94, [#allocation4]
    $region25: #{tpu_custom_call.1} parent=1 // pred_fallthru
      _
    // Predicated region
    $region26: #{tpu_custom_call.1} parent=1 // pred_check
      _
    $region27: #{tpu_custom_call.1} parent=1 // pred_check_branch
      %98 = sbr.rel (0) target = $region29
    $region28: #{tpu_custom_call.1} parent=1 // pred_region
      %100 = dma.done [#allocation4], 128
    $region29: #{tpu_custom_call.1} parent=1 // pred_fallthru
      _
    %101 = vsyncpa [#allocation3], 1
    %102 = vsyncpa [#allocation6], 1
    %103 = vsyncpa [#allocation4], 1

</llo_original>
